<compile_context>
chip_gen: v5e
topology: v5e:2x2
jax: 0.10.0
libtpu: 0.0.40
codegen_flags: <defaults>
</compile_context>

<pallas_src>
import jax
import jax.numpy as jnp
from jax.experimental import pallas as pl
from jax.experimental.pallas import tpu as pltpu


def _round_up(x, m):
    return ((x + m - 1) // m) * m


def _vmem_limit_bytes():
    """Generation-aware scoped-VMEM limit (v7x: 64 MiB/TC, v5e/v6e: 128 MiB)."""
    cap = 64 * 1024 * 1024
    try:
        cap = int(getattr(pltpu.get_tpu_info(), "vmem_capacity_bytes", cap))
    except Exception:
        pass
    return int(min(cap * 3 // 4, 96 * 1024 * 1024))


def _choose_batch_tile(rows, width, itemsize, vmem_limit):
    """Rows per x tile, sized by bytes (lane-padding + dtype aware)."""
    row_bytes = _round_up(width, 128) * itemsize          # physical VMEM bytes per row
    # Target ~2-8 MiB per (double-buffered) x tile: measured tile sweeps reach
    # ~85% of HBM roofline at >= 2 MiB; stay well inside the scoped-VMEM limit.
    tile_bytes = max(2 * 1024 * 1024, min(8 * 1024 * 1024, vmem_limit // 6))
    tb = max(8, (tile_bytes // row_bytes) // 8 * 8)
    # Guarantee >= 2 grid steps so the second TensorCore (v7x megacore) and the
    # DMA/compute pipeline actually engage.
    if rows > 8:
        tb = min(tb, max(8, _round_up(pl.cdiv(rows, 2), 8)))
    return min(tb, _round_up(rows, 8))


def _make_kernel(seg, r):
    """seg = logical feature dim D; r = logical rows packed per physical row."""
    def kernel(x_ref, w_ref, b_ref, o_ref):
        # x_ref: (tb, width) VMEM (native dtype); w_ref: (1, width) f32 VMEM;
        # b_ref: (1,) SMEM; o_ref: (tb, r) VMEM.
        x = x_ref[...].astype(jnp.float32)                 # free VPU cast
        prod = x * w_ref[...]                              # broadcast over batch tile
        if r == 1:
            z = jnp.sum(prod, axis=1, keepdims=True)       # (tb, 1) lane reduce
        else:
            # Segmented lane reduce: each physical row holds r logical rows of seg lanes.
            z = jnp.concatenate(
                [jnp.sum(prod[:, k * seg:(k + 1) * seg], axis=1, keepdims=True)
                 for k in range(r)],
                axis=1)                                    # (tb, r)
        z = z + b_ref[0]                                   # scalar bias from SMEM
        o_ref[...] = pl.reciprocal(1.0 + jnp.exp(-z)).astype(o_ref.dtype)
    return kernel


def logistic_regression_forward(x, weight, bias):
    """Pallas forward of sigmoid(x @ weight.T + bias).

    x: (B, D); weight: (1, D) (torch nn.Linear layout); bias: (1,).
    """
    B, D = x.shape
    w = weight.reshape(1, D).astype(jnp.float32)
    b = bias.reshape(-1).astype(jnp.float32)

    # Lane-dense repack for small D (zero-copy row regroup, no element movement
    # in logical order): (B, D) -> (B*D/128, 128).
    r = 128 // D if (D < 128 and 128 % D == 0 and (B * D) % 128 == 0) else 1
    if r > 1:
        rows, width = (B * D) // 128, 128
        x_in = x.reshape(rows, width)
        w_in = jnp.tile(w, (1, r))                         # (1, 128)
    else:
        rows, width = B, D
        x_in = x
        w_in = w

    vmem_limit = _vmem_limit_bytes()
    tb = _choose_batch_tile(rows, width, jnp.dtype(x.dtype).itemsize, vmem_limit)
    n_tiles = pl.cdiv(rows, tb)                            # ragged last tile is masked

    out = pl.pallas_call(
        _make_kernel(D, r),
        out_shape=jax.ShapeDtypeStruct((rows, r), x.dtype),
        grid=(n_tiles,),
        in_specs=[
            pl.BlockSpec((tb, width), lambda i: (i, 0)),           # x tile (auto double-buffered)
            pl.BlockSpec((1, width), lambda i: (0, 0)),            # weight, lane-dense
            pl.BlockSpec(memory_space=pltpu.MemorySpace.SMEM),     # bias scalar
        ],
        out_specs=pl.BlockSpec((tb, r), lambda i: (i, 0)),
        compiler_params=pltpu.CompilerParams(
            dimension_semantics=("parallel",),                     # megacore split on v7x
            vmem_limit_bytes=vmem_limit,
        ),
    )(x_in, w_in, b)

    return out.reshape(B, 1)


if __name__ == "__main__":
    key = jax.random.PRNGKey(0)
    kx, kw, kb, kx2, kw2, kb2 = jax.random.split(key, 6)

    # Mimic nn.Linear(input_dim, 1) parameter shapes / init bounds.
    batch, input_dim = 200, 32             # ragged tiles + lane-dense (D=32) path
    x = jax.random.normal(kx, (batch, input_dim), dtype=jnp.float32)
    bound = 1.0 / (input_dim ** 0.5)
    weight = jax.random.uniform(kw, (1, input_dim), minval=-bound, maxval=bound,
                                dtype=jnp.float32)
    bias = jax.random.uniform(kb, (1,), minval=-bound, maxval=bound,
                              dtype=jnp.float32)

    out = jax.block_until_ready(logistic_regression_forward(x, weight, bias))
    ref = jax.nn.sigmoid(x @ weight.T + bias)
    assert out.shape == (batch, 1)
    assert jnp.allclose(out, ref, atol=1e-5), "mismatch vs reference (lane-dense path)"

    # Also exercise the general path (D not a divisor of 128).
    batch2, dim2 = 200, 160
    x2 = jax.random.normal(kx2, (batch2, dim2), dtype=jnp.float32)
    bound2 = 1.0 / (dim2 ** 0.5)
    w2 = jax.random.uniform(kw2, (1, dim2), minval=-bound2, maxval=bound2,
                            dtype=jnp.float32)
    b2 = jax.random.uniform(kb2, (1,), minval=-bound2, maxval=bound2,
                            dtype=jnp.float32)
    out2 = jax.block_until_ready(logistic_regression_forward(x2, w2, b2))
    ref2 = jax.nn.sigmoid(x2 @ w2.T + b2)
    assert jnp.allclose(out2, ref2, atol=1e-5), "mismatch vs reference (general path)"

    print("KERNEL_OK")
</pallas_src>

<mosaic_0001>
module attributes {stable_mosaic.version = 11 : i64} {
  func.func @kernel(%arg0: i32, %arg1: memref<32x128xf32, #tpu.memory_space<vmem>>, %arg2: memref<1x128xf32, #tpu.memory_space<vmem>>, %arg3: memref<1xf32, #tpu.memory_space<smem>>, %arg4: memref<32x4xf32, #tpu.memory_space<vmem>>) attributes {dimension_semantics = [#tpu.dimension_semantics<parallel>], iteration_bounds = array<i64: 2>, scalar_prefetch = 0 : i64, scratch_operands = 0 : i64, tpu.core_type = #tpu.core_type<tc>, window_params = [{transform_indices = @transform_0, window_bounds = array<i64: 32, 128>}, {pipeline_mode = #tpu.pipeline_mode<synchronous>, transform_indices = @transform_1, window_bounds = array<i64: 1, 128>}, {transform_indices = @transform_2, window_bounds = array<i64: 1>}, {transform_indices = @transform_3, window_bounds = array<i64: 32, 4>}]} {
    %c0 = arith.constant 0 : index
    %c0_0 = arith.constant 0 : index
    %0 = vector.load %arg1[%c0, %c0_0] : memref<32x128xf32, #tpu.memory_space<vmem>>, vector<32x128xf32>
    %c0_1 = arith.constant 0 : index
    %c0_2 = arith.constant 0 : index
    %1 = vector.load %arg2[%c0_1, %c0_2] : memref<1x128xf32, #tpu.memory_space<vmem>>, vector<1x128xf32>
    %2 = vector.broadcast %1 : vector<1x128xf32> to vector<32x128xf32>
    %3 = arith.mulf %0, %2 : vector<32x128xf32>
    %4 = vector.extract_strided_slice %3 {offsets = [0, 0], sizes = [32, 32], strides = [1, 1]} : vector<32x128xf32> to vector<32x32xf32>
    %cst = arith.constant dense<0.000000e+00> : vector<32xf32>
    %5 = vector.multi_reduction <add>, %4, %cst [1] : vector<32x32xf32> to vector<32xf32>
    %6 = vector.shape_cast %5 : vector<32xf32> to vector<32x1xf32>
    %7 = vector.extract_strided_slice %3 {offsets = [0, 32], sizes = [32, 32], strides = [1, 1]} : vector<32x128xf32> to vector<32x32xf32>
    %cst_3 = arith.constant dense<0.000000e+00> : vector<32xf32>
    %8 = vector.multi_reduction <add>, %7, %cst_3 [1] : vector<32x32xf32> to vector<32xf32>
    %9 = vector.shape_cast %8 : vector<32xf32> to vector<32x1xf32>
    %10 = vector.extract_strided_slice %3 {offsets = [0, 64], sizes = [32, 32], strides = [1, 1]} : vector<32x128xf32> to vector<32x32xf32>
    %cst_4 = arith.constant dense<0.000000e+00> : vector<32xf32>
    %11 = vector.multi_reduction <add>, %10, %cst_4 [1] : vector<32x32xf32> to vector<32xf32>
    %12 = vector.shape_cast %11 : vector<32xf32> to vector<32x1xf32>
    %13 = vector.extract_strided_slice %3 {offsets = [0, 96], sizes = [32, 32], strides = [1, 1]} : vector<32x128xf32> to vector<32x32xf32>
    %cst_5 = arith.constant dense<0.000000e+00> : vector<32xf32>
    %14 = vector.multi_reduction <add>, %13, %cst_5 [1] : vector<32x32xf32> to vector<32xf32>
    %15 = vector.shape_cast %14 : vector<32xf32> to vector<32x1xf32>
    %16 = tpu.concatenate %6, %9, %12, %15 in 1 : vector<32x1xf32>, vector<32x1xf32>, vector<32x1xf32>, vector<32x1xf32> -> vector<32x4xf32>
    %c0_6 = arith.constant 0 : index
    %17 = memref.load %arg3[%c0_6] : memref<1xf32, #tpu.memory_space<smem>>
    %18 = vector.broadcast %17 : f32 to vector<32x4xf32>
    %19 = arith.addf %16, %18 : vector<32x4xf32>
    %cst_7 = arith.constant 0.000000e+00 : f32
    %20 = vector.broadcast %cst_7 : f32 to vector<32x4xf32>
    %21 = arith.subf %20, %19 : vector<32x4xf32>
    %22 = math.exp %21 : vector<32x4xf32>
    %cst_8 = arith.constant 1.000000e+00 : f32
    %23 = vector.broadcast %cst_8 : f32 to vector<32x4xf32>
    %24 = arith.addf %23, %22 : vector<32x4xf32>
    %25 = tpu.reciprocal %24 : vector<32x4xf32> -> vector<32x4xf32>
    %c0_9 = arith.constant 0 : index
    %c0_10 = arith.constant 0 : index
    %26 = vector.load %arg4[%c0_9, %c0_10] : memref<32x4xf32, #tpu.memory_space<vmem>>, vector<32x4xf32>
    tpu.vector_store %arg4[%c0_9, %c0_10], %25 {strides = array<i32>} : memref<32x4xf32, #tpu.memory_space<vmem>>, vector<32x4xf32>,
    return
  }
  func.func @transform_0(%arg0: i32) -> (i32, i32) {
    %c0_i32 = arith.constant 0 : i32
    %c0_i32_0 = arith.constant 0 : i32
    return %arg0, %c0_i32 : i32, i32
  }
  func.func @transform_1(%arg0: i32) -> (i32, i32) {
    %c0_i32 = arith.constant 0 : i32
    %c0_i32_0 = arith.constant 0 : i32
    %c0_i32_1 = arith.constant 0 : i32
    return %c0_i32, %c0_i32_0 : i32, i32
  }
  func.func @transform_2(%arg0: i32) -> i32 {
    %c0_i32 = arith.constant 0 : i32
    %c0_i32_0 = arith.constant 0 : i32
    return %c0_i32 : i32
  }
  func.func @transform_3(%arg0: i32) -> (i32, i32) {
    %c0_i32 = arith.constant 0 : i32
    %c0_i32_0 = arith.constant 0 : i32
    return %arg0, %c0_i32 : i32, i32
  }
}

</mosaic_0001>

<llo_original>
// kernel: tpu_custom_call.1
$region0: #{tpu_custom_call.1}
  #allocation0 [shape = 'u32[]', space=smem, size = 0x4, offset = 0x4, fixed_abs, tag = 'smem constant byte address 0x4 - core index']
  #allocation1 [shape = 'u32[72,128]{1,0:T(1,128)}', space=vmem, size = 0x9000, scoped, tag = 'internal scratch']
  #allocation2 [shape = 'f32[1]{0:T(128)S(6)}', space=smem, size = 0x200, scoped, tag = 'scoped memory for tpu_custom_call.1']
  %s0 = inlined_call_operand.hbm [shape: f32[50,128], index: 0, kind: input, shape index: {}]
  %s1 = inlined_call_operand.vmem [shape: f32[1,128], index: 1, kind: input, shape index: {}]
  %s2 = inlined_call_operand.<no memory space> [shape: f32[1], index: 2, kind: input, shape index: {}]
  %s3 = inlined_call_operand.vmem [shape: f32[50,4], index: 3, kind: output, shape index: {}]
  %s4 = sld [smem:[#allocation0]]
  $region97: #{tpu_custom_call.1} parent=0
    _
  %s6 = ssub.s32 1, %s4
  %s7 = scalar_select 0, %s6, %s4
  %8 = sst [smem:[#allocation2]] %s2
  $region1: #{tpu_custom_call.1} parent=0
    #allocation3 [shape = 'u8[32768]{0}', space=vmem, size = 0x8000, scoped, tag = 'input window, operand 0']
    #allocation4 [shape = 's32[2]{0}', space=sflag, size = 0x8, scoped, tag = 'scoped memory for tpu_custom_call.1']
    #allocation5 [shape = 'u8[32768]{0}', space=vmem, size = 0x8000, scoped, tag = 'output window, operand 0']
    %9 = vsyncpa [#allocation4], 0
    %s10 = scalar_lea.sflag [#allocation4], 1
    %11 = vsyncpa %s10, 0
    loop: start=0, step=1, limit=4
    $region2: #{tpu_custom_call.1} parent=1 // loop_pre_header
      _
    $region3: #{tpu_custom_call.1} parent=1 // loop_header
      %s13 = sphi 0, %s17
      %p14 = scmp.ge.s32.totalorder %s13, 4
      %s23 = sphi 0, %s25
      %s26 = sphi 0, %s23
      %s27 = sphi 0, %s26
      %s43 = sphi 0, %s27
      %s47 = sphi 0, %s47
      %s49 = sphi 0, %s47
      %s50 = sphi 0, %s49
      %s64 = sphi 0, %s50
      %s68 = sphi 0, %s68
      %s70 = sphi 0, %s68
      %s71 = sphi 0, %s70
      %s85 = sphi 0, %s71
      %s91 = sphi 0, %s93
      %s94 = sphi 0, %s91
      %s95 = sphi 0, %s94
      %s111 = sphi 0, %s95
    $region4: #{tpu_custom_call.1} parent=1 // loop_header_branch
      %16 = sbr.rel (%p14) target = $region8
    $region5: #{tpu_custom_call.1} parent=1 // loop_body
      %s18 = ssub.s32 %s13, 1
      %s19 = ssub.s32 %s13, 2
      %s20 = sadd.s32 %s13, 1
      %s21 = ssub.s32 %s13, %s20
      %p22 = scmp.eq.s32.totalorder %s21, 0
      %s24 = sadd.s32 %s23, 1
      %s25 = scalar_select %p22, %s23, %s24
      %p28 = pneg %p22
      %p29 = scmp.eq.s32.totalorder %s13, 1
      %p30 = por %p28, %p29
      %p31 = scmp.ne.s32.totalorder %s23, %s26
      %p32 = scmp.eq.s32.totalorder %s13, 0
      %p33 = por %p31, %p32
      %p34 = scmp.ne.s32.totalorder %s23, %s26
      %p35 = scmp.eq.s32.totalorder %s18, 1
      %p36 = por %p34, %p35
      %p37 = scmp.ne.s32.totalorder %s26, %s27
      %p38 = scmp.eq.s32.totalorder %s18, 0
      %p39 = por %p37, %p38
      %p40 = scmp.ne.s32.totalorder %s26, %s27
      %p41 = scmp.eq.s32.totalorder %s19, 1
      %p42 = por %p40, %p41
      %p44 = scmp.ne.s32.totalorder %s27, %s43
      %p45 = scmp.eq.s32.totalorder %s19, 0
      %p46 = por %p44, %p45
      %s48 = sadd.s32 %s47, 1
      %p51 = scmp.eq.s32.totalorder %s13, 1
      %p52 = scmp.ne.s32.totalorder %s47, %s49
      %p53 = scmp.eq.s32.totalorder %s13, 0
      %p54 = por %p52, %p53
      %p55 = scmp.ne.s32.totalorder %s47, %s49
      %p56 = scmp.eq.s32.totalorder %s18, 1
      %p57 = por %p55, %p56
      %p58 = scmp.ne.s32.totalorder %s49, %s50
      %p59 = scmp.eq.s32.totalorder %s18, 0
      %p60 = por %p58, %p59
      %p61 = scmp.ne.s32.totalorder %s49, %s50
      %p62 = scmp.eq.s32.totalorder %s19, 1
      %p63 = por %p61, %p62
      %p65 = scmp.ne.s32.totalorder %s50, %s64
      %p66 = scmp.eq.s32.totalorder %s19, 0
      %p67 = por %p65, %p66
      %s69 = sadd.s32 %s68, 1
      %p72 = scmp.eq.s32.totalorder %s13, 1
      %p73 = scmp.ne.s32.totalorder %s68, %s70
      %p74 = scmp.eq.s32.totalorder %s13, 0
      %p75 = por %p73, %p74
      %p76 = scmp.ne.s32.totalorder %s68, %s70
      %p77 = scmp.eq.s32.totalorder %s18, 1
      %p78 = por %p76, %p77
      %p79 = scmp.ne.s32.totalorder %s70, %s71
      %p80 = scmp.eq.s32.totalorder %s18, 0
      %p81 = por %p79, %p80
      %p82 = scmp.ne.s32.totalorder %s70, %s71
      %p83 = scmp.eq.s32.totalorder %s19, 1
      %p84 = por %p82, %p83
      %p86 = scmp.ne.s32.totalorder %s71, %s85
      %p87 = scmp.eq.s32.totalorder %s19, 0
      %p88 = por %p86, %p87
      %s89 = ssub.s32 %s13, %s20
      %p90 = scmp.eq.s32.totalorder %s89, 0
      %s92 = sadd.s32 %s91, 1
      %s93 = scalar_select %p90, %s91, %s92
      %p96 = pneg %p90
      %p97 = scmp.eq.s32.totalorder %s13, 1
      %p98 = por %p96, %p97
      %p99 = scmp.ne.s32.totalorder %s91, %s94
      %p100 = scmp.eq.s32.totalorder %s13, 0
      %p101 = por %p99, %p100
      %p102 = scmp.ne.s32.totalorder %s91, %s94
      %p103 = scmp.eq.s32.totalorder %s18, 1
      %p104 = por %p102, %p103
      %p105 = scmp.ne.s32.totalorder %s94, %s95
      %p106 = scmp.eq.s32.totalorder %s18, 0
      %p107 = por %p105, %p106
      %p108 = scmp.ne.s32.totalorder %s94, %s95
      %p109 = scmp.eq.s32.totalorder %s19, 1
      %p110 = por %p108, %p109
      %p112 = scmp.ne.s32.totalorder %s95, %s111
      %p113 = scmp.eq.s32.totalorder %s19, 0
      %p114 = por %p112, %p113
      %p115 = scmp.le.s32.totalorder 1, %s13
      %p116 = scmp.lt.s32.totalorder %s13, 3
      %p117 = pnand %p115, %p116
      %p118 = pneg %p117
      // Predicated region
      $region9: #{tpu_custom_call.1} parent=5 // pred_check
        _
      $region10: #{tpu_custom_call.1} parent=5 // pred_check_branch
        %120 = sbr.rel (%p117) target = $region12
      $region11: #{tpu_custom_call.1} parent=5 // pred_region
        %s121 = ssub.s32 %s13, 1
        // Predicated region
        $region13: #{tpu_custom_call.1} parent=11 // pred_check
          %p122 = pneg %p60
        $region14: #{tpu_custom_call.1} parent=11 // pred_check_branch
          %124 = sbr.rel (%p122) target = $region16
        $region15: #{tpu_custom_call.1} parent=11 // pred_region
          _
        $region16: #{tpu_custom_call.1} parent=11 // pred_fallthru
          _
        // Predicated region
        $region17: #{tpu_custom_call.1} parent=11 // pred_check
          %p125 = pneg %p81
        $region18: #{tpu_custom_call.1} parent=11 // pred_check_branch
          %127 = sbr.rel (%p125) target = $region20
        $region19: #{tpu_custom_call.1} parent=11 // pred_region
          _
        $region20: #{tpu_custom_call.1} parent=11 // pred_fallthru
          _
      $region12: #{tpu_custom_call.1} parent=5 // pred_fallthru
        _
      %p128 = scmp.lt.s32.totalorder %s13, 2
      // Predicated region
      $region21: #{tpu_custom_call.1} parent=5 // pred_check
        %p129 = pneg %p128
      $region22: #{tpu_custom_call.1} parent=5 // pred_check_branch
        %131 = sbr.rel (%p129) target = $region24
      $region23: #{tpu_custom_call.1} parent=5 // pred_region
        // Predicated region
        $region25: #{tpu_custom_call.1} parent=23 // pred_check
          %p132 = pneg %p33
        $region26: #{tpu_custom_call.1} parent=23 // pred_check_branch
          %134 = sbr.rel (%p132) target = $region28
        $region27: #{tpu_custom_call.1} parent=23 // pred_region
          %s135 = sand.u32 %s23, 1
          %s136 = scalar_lea.sflag [#allocation4], %s135
          %s137 = sand.u32 %s23, 1
          %s138 = smul.addr %s137, 32
          %s139 = scalar_lea.vmem [#allocation3], %s138
          %s140 = smul.u32 4, %s13
          %s141 = ssub.s32 7, %s140
          %p142 = scmp.lt.s32.totalorder %s141, 4
          %s143 = scalar_select %p142, %s141, 4
          %s144 = smul.u32 8, %s143
          %s145 = ssub.s32 32, %s144
          %s146 = sshll.u32 %s145, 4
          %147 = vsyncadd %s136, %s146
          %p148 = scmp.ne.s32.totalorder 0, %s144
          %s149 = smul.addr %s140, 8
          %s150 = scalar_lea.hbm %s0, %s149
          %s151 = smul.u32 8, %s143
          %s152 = sshll.u32 %s150, 4
          %s153 = int_to_ptr.hbm [resolvable:$true] %s152
          %s154 = sshll.u32 %s139, 4
          %s155 = int_to_ptr.vmem [resolvable:$true] %s154
          %s156 = sshll.u32 %s151, 4
          %160 = dma.hbm_to_vmem [thread:$0]  (%p148), %s153, %s156, %s155, %s136, 128, 128, 8
        $region28: #{tpu_custom_call.1} parent=23 // pred_fallthru
          _
      $region24: #{tpu_custom_call.1} parent=5 // pred_fallthru
        _
      %p161 = scmp.le.s32.totalorder 1, %s13
      %p162 = scmp.lt.s32.totalorder %s13, 3
      %p163 = pnand %p161, %p162
      %p164 = pneg %p163
      // Predicated region
      $region29: #{tpu_custom_call.1} parent=5 // pred_check
        _
      $region30: #{tpu_custom_call.1} parent=5 // pred_check_branch
        %166 = sbr.rel (%p163) target = $region32
      $region31: #{tpu_custom_call.1} parent=5 // pred_region
        %s167 = ssub.s32 %s13, 1
        %s168 = sand.u32 %s26, 1
        %s169 = scalar_lea.sflag [#allocation4], %s168
        %s170 = sand.u32 %s26, 1
        %s171 = smul.addr %s170, 32
        %s172 = scalar_lea.vmem [#allocation3], %s171
        // Predicated region
        $region33: #{tpu_custom_call.1} parent=31 // pred_check
          %p173 = pneg %p39
        $region34: #{tpu_custom_call.1} parent=31 // pred_check_branch
          %175 = sbr.rel (%p173) target = $region36
        $region35: #{tpu_custom_call.1} parent=31 // pred_region
          %177 = dma.done %s169, 512
        $region36: #{tpu_custom_call.1} parent=31 // pred_fallthru
          _
        %s178 = sand.u32 %s26, 1
        %s179 = scalar_lea.sflag [#allocation4], %s178
        %s180 = sand.u32 %s26, 1
        %s181 = smul.addr %s180, 32
        %s182 = scalar_lea.vmem [#allocation3], %s181
        %p183 = pneg %p39
        %p184 = pneg %p36
        %p185 = pneg %p60
        %p186 = pneg %p57
        %p187 = pneg %p81
        %p188 = pneg %p78
        %p189 = pneg %p107
        %p190 = pneg %p104
        %s191 = sand.u32 %s94, 1
        %s192 = sand.u32 %s94, 1
        %s193 = smul.addr %s192, 32
        %s194 = scalar_lea.vmem [#allocation5], %s193
        %s195 = smul.u32 4, %s18
        %s196 = ssub.s32 7, %s195
        %p197 = scmp.lt.s32.totalorder %s196, 4
        %s198 = scalar_select %p197, %s196, 4
        %s199 = smul.u32 8, %s198
        %s200 = smul.u32 4, %s18
        %s201 = ssub.s32 7, %s200
        %p202 = scmp.lt.s32.totalorder %s201, 4
        %s203 = scalar_select %p202, %s201, 4
        %s204 = smul.u32 8, %s203
        %v205 = vld [vmem:[%s172] sm:$0xff]
        %v206 = vld [vmem:[%s172 + $0x8] sm:$0xff]
        %v207 = vld [vmem:[%s172 + $0x10] sm:$0xff]
        %v208 = vld [vmem:[%s172 + $0x18] sm:$0xff]
        %v209 = vld [vmem:[%s1] sm:$0x1]
        %v211 = vperm.slane %v209, 0
        %v213 = vmul.f32 %v205, %v211
        %v214 = vmul.f32 %v206, %v211
        %v215 = vmul.f32 %v207, %v211
        %v216 = vmul.f32 %v208, %v211
        %vm217 = vcmask 261120
        %v218 = vsel %vm217, %v213, 0.0
        %219 = vadd.xlane.f32.xlu0 %v218
        %v220 = vpop.xlane.xlu0 %219
        %v221 = vsel %vm217, %v214, 0.0
        %222 = vadd.xlane.f32.xlu0 %v221
        %v223 = vpop.xlane.xlu0 %222
        %v224 = vsel %vm217, %v215, 0.0
        %225 = vadd.xlane.f32.xlu0 %v224
        %v226 = vpop.xlane.xlu0 %225
        %v227 = vsel %vm217, %v216, 0.0
        %228 = vadd.xlane.f32.xlu0 %v227
        %v229 = vpop.xlane.xlu0 %228
        %234 = vrot.lane.b32.xlu0 %v213, 96
        %v235 = vpop.permute.xlu0 %234
        %236 = vrot.lane.b32.xlu0 %v214, 96
        %v237 = vpop.permute.xlu0 %236
        %238 = vrot.lane.b32.xlu0 %v215, 96
        %v239 = vpop.permute.xlu0 %238
        %240 = vrot.lane.b32.xlu0 %v216, 96
        %v241 = vpop.permute.xlu0 %240
        %v246 = vsel %vm217, %v235, 0.0
        %247 = vadd.xlane.f32.xlu0 %v246
        %v248 = vpop.xlane.xlu0 %247
        %v249 = vsel %vm217, %v237, 0.0
        %250 = vadd.xlane.f32.xlu0 %v249
        %v251 = vpop.xlane.xlu0 %250
        %v252 = vsel %vm217, %v239, 0.0
        %253 = vadd.xlane.f32.xlu0 %v252
        %v254 = vpop.xlane.xlu0 %253
        %v255 = vsel %vm217, %v241, 0.0
        %256 = vadd.xlane.f32.xlu0 %v255
        %v257 = vpop.xlane.xlu0 %256
        %258 = vrot.lane.b32.xlu0 %v213, 64
        %v259 = vpop.permute.xlu0 %258
        %260 = vrot.lane.b32.xlu0 %v214, 64
        %v261 = vpop.permute.xlu0 %260
        %262 = vrot.lane.b32.xlu0 %v215, 64
        %v263 = vpop.permute.xlu0 %262
        %264 = vrot.lane.b32.xlu0 %v216, 64
        %v265 = vpop.permute.xlu0 %264
        %v270 = vsel %vm217, %v259, 0.0
        %271 = vadd.xlane.f32.xlu0 %v270
        %v272 = vpop.xlane.xlu0 %271
        %v273 = vsel %vm217, %v261, 0.0
        %274 = vadd.xlane.f32.xlu0 %v273
        %v275 = vpop.xlane.xlu0 %274
        %v276 = vsel %vm217, %v263, 0.0
        %277 = vadd.xlane.f32.xlu0 %v276
        %v278 = vpop.xlane.xlu0 %277
        %v279 = vsel %vm217, %v265, 0.0
        %280 = vadd.xlane.f32.xlu0 %v279
        %v281 = vpop.xlane.xlu0 %280
        %282 = vrot.lane.b32.xlu0 %v213, 32
        %v283 = vpop.permute.xlu0 %282
        %284 = vrot.lane.b32.xlu0 %v214, 32
        %v285 = vpop.permute.xlu0 %284
        %286 = vrot.lane.b32.xlu0 %v215, 32
        %v287 = vpop.permute.xlu0 %286
        %288 = vrot.lane.b32.xlu0 %v216, 32
        %v289 = vpop.permute.xlu0 %288
        %v294 = vsel %vm217, %v283, 0.0
        %295 = vadd.xlane.f32.xlu0 %v294
        %v296 = vpop.xlane.xlu0 %295
        %v297 = vsel %vm217, %v285, 0.0
        %298 = vadd.xlane.f32.xlu0 %v297
        %v299 = vpop.xlane.xlu0 %298
        %v300 = vsel %vm217, %v287, 0.0
        %301 = vadd.xlane.f32.xlu0 %v300
        %v302 = vpop.xlane.xlu0 %301
        %v303 = vsel %vm217, %v289, 0.0
        %304 = vadd.xlane.f32.xlu0 %v303
        %v305 = vpop.xlane.xlu0 %304
        %vm306 = vcmask 7168
        %v307 = vsel %vm306, %v220, %v248
        %v308 = vsel %vm306, %v223, %v251
        %v309 = vsel %vm306, %v226, %v254
        %v310 = vsel %vm306, %v229, %v257
        %vm311 = vcmask 15360
        %v312 = vsel %vm311, %v307, %v272
        %v313 = vsel %vm311, %v308, %v275
        %v314 = vsel %vm311, %v309, %v278
        %v315 = vsel %vm311, %v310, %v281
        %vm316 = vcmask 23552
        %v317 = vsel %vm316, %v312, %v296
        %v318 = vsel %vm316, %v313, %v299
        %v319 = vsel %vm316, %v314, %v302
        %v320 = vsel %vm316, %v315, %v305
        %s321 = sld [smem:[#allocation2]]
        %v322 = vstv %s321
        %v323 = vadd.f32 %v317, %v322
        %v324 = vadd.f32 %v318, %v322
        %v325 = vadd.f32 %v319, %v322
        %v326 = vadd.f32 %v320, %v322
        %v327 = vsub.f32 0.0, %v323
        %v328 = vsub.f32 0.0, %v324
        %v329 = vsub.f32 0.0, %v325
        %v330 = vsub.f32 0.0, %v326
        %v331 = vmul.f32 %v327, 1.442695
        %v332 = vpow.pop %v331
        %v333 = vmul.f32 %v328, 1.442695
        %v334 = vpow.pop %v333
        %v335 = vmul.f32 %v329, 1.442695
        %v336 = vpow.pop %v335
        %v337 = vmul.f32 %v330, 1.442695
        %v338 = vpow.pop %v337
        %v339 = vadd.f32 %v332, 1.0
        %v340 = vadd.f32 %v334, 1.0
        %v341 = vadd.f32 %v336, 1.0
        %v342 = vadd.f32 %v338, 1.0
        %v343 = vrcp.pop %v339
        %v344 = vmul.f32 %v339, %v343
        %v345 = vsub.f32 1.0, %v344
        %v346 = vmul.f32 %v343, %v345
        %v347 = vadd.f32 %v343, %v346
        %vm348 = vweird.f32 %v339
        %vm349 = vweird.f32 %v343
        %vm350 = vmor %vm348, %vm349
        %v351 = vsel %vm350, %v343, %v347
        %v352 = vand.u32 2147483647, %v339
        %vm353 = vcmp.eq.f32.partialorder %v352, 8.507059e+37
        %v354 = vand.u32 %v339, 2147483648
        %v355 = vor.u32 1.1754944e-38, %v354
        %v356 = vsel %vm353, %v355, %v351
        %v357 = vrcp.pop %v340
        %v358 = vmul.f32 %v340, %v357
        %v359 = vsub.f32 1.0, %v358
        %v360 = vmul.f32 %v357, %v359
        %v361 = vadd.f32 %v357, %v360
        %vm362 = vweird.f32 %v340
        %vm363 = vweird.f32 %v357
        %vm364 = vmor %vm362, %vm363
        %v365 = vsel %vm364, %v357, %v361
        %v366 = vand.u32 2147483647, %v340
        %vm367 = vcmp.eq.f32.partialorder %v366, 8.507059e+37
        %v368 = vand.u32 %v340, 2147483648
        %v369 = vor.u32 1.1754944e-38, %v368
        %v370 = vsel %vm367, %v369, %v365
        %v371 = vrcp.pop %v341
        %v372 = vmul.f32 %v341, %v371
        %v373 = vsub.f32 1.0, %v372
        %v374 = vmul.f32 %v371, %v373
        %v375 = vadd.f32 %v371, %v374
        %vm376 = vweird.f32 %v341
        %vm377 = vweird.f32 %v371
        %vm378 = vmor %vm376, %vm377
        %v379 = vsel %vm378, %v371, %v375
        %v380 = vand.u32 2147483647, %v341
        %vm381 = vcmp.eq.f32.partialorder %v380, 8.507059e+37
        %v382 = vand.u32 %v341, 2147483648
        %v383 = vor.u32 1.1754944e-38, %v382
        %v384 = vsel %vm381, %v383, %v379
        %v385 = vrcp.pop %v342
        %v386 = vmul.f32 %v342, %v385
        %v387 = vsub.f32 1.0, %v386
        %v388 = vmul.f32 %v385, %v387
        %v389 = vadd.f32 %v385, %v388
        %vm390 = vweird.f32 %v342
        %vm391 = vweird.f32 %v385
        %vm392 = vmor %vm390, %vm391
        %v393 = vsel %vm392, %v385, %v389
        %v394 = vand.u32 2147483647, %v342
        %vm395 = vcmp.eq.f32.partialorder %v394, 8.507059e+37
        %v396 = vand.u32 %v342, 2147483648
        %v397 = vor.u32 1.1754944e-38, %v396
        %v398 = vsel %vm395, %v397, %v393
        %vm399 = vcmask 31744
        %400 = vst.msk [vmem:[%s194] sm:$0xff] %vm399, %v356
        %401 = vst.msk [vmem:[%s194 + $0x8] sm:$0xff] %vm399, %v370
        %402 = vst.msk [vmem:[%s194 + $0x10] sm:$0xff] %vm399, %v384
        %403 = vst.msk [vmem:[%s194 + $0x18] sm:$0xff] %vm399, %v398
        %s404 = sand.u32 %s94, 1
        %s405 = sand.u32 %s94, 1
        %s406 = smul.addr %s405, 32
        %s407 = scalar_lea.vmem [#allocation5], %s406
        // Predicated region
        $region37: #{tpu_custom_call.1} parent=31 // pred_check
          %p408 = pneg %p104
        $region38: #{tpu_custom_call.1} parent=31 // pred_check_branch
          %410 = sbr.rel (%p408) target = $region40
        $region39: #{tpu_custom_call.1} parent=31 // pred_region
          %s411 = smul.u32 4, %s18
          %s412 = ssub.s32 7, %s411
          %p413 = scmp.lt.s32.totalorder %s412, 4
          %s414 = scalar_select %p413, %s412, 4
          %s415 = smul.u32 8, %s414
          %p416 = scmp.ne.s32.totalorder 0, %s415
          %s417 = smul.addr %s411, 8
          %s418 = scalar_lea.vmem %s3, %s417
          // Predicated region
          $region41: #{tpu_custom_call.1} parent=39 // pred_check
            %p419 = pneg %p416
          $region42: #{tpu_custom_call.1} parent=39 // pred_check_branch
            %421 = sbr.rel (%p419) target = $region44
          $region43: #{tpu_custom_call.1} parent=39 // pred_region
            // Predicated region
            $region45: #{tpu_custom_call.1} parent=43 // pred_check
              _
            $region46: #{tpu_custom_call.1} parent=43 // pred_check_branch
              %423 = sbr.rel (0) target = $region48
            $region47: #{tpu_custom_call.1} parent=43 // pred_region
              // Predicated region
              $region67: #{tpu_custom_call.1} parent=47 // pred_check
                _
              $region68: #{tpu_custom_call.1} parent=47 // pred_check_branch
                %479 = sbr.rel (0) target = $region70
              $region69: #{tpu_custom_call.1} parent=47 // pred_region
                %s480 = sshrl.u32 %s414, 2
                // While loop
                $region71: #{tpu_custom_call.1} parent=69 // loop_pre_header
                  _
                $region72: #{tpu_custom_call.1} parent=69 // loop_header
                  %s482 = sphi 0, %s484
                  %p483 = scmp.ge.s32.totalorder %s482, %s480
                  %s487 = sphi 0, %s500
                  %s488 = sphi %s407, %s503
                  %s489 = sphi %s418, %s504
                $region73: #{tpu_custom_call.1} parent=69 // loop_header_branch
                  %486 = sbr.rel (%p483) target = $region77
                $region74: #{tpu_custom_call.1} parent=69 // loop_body
                  %v490 = vld [vmem:[%s488] sm:$0xff]
                  %491 = vst [vmem:[%s489] sm:$0xff] %v490
                  %v492 = vld [vmem:[%s488 + $0x8] sm:$0xff]
                  %493 = vst [vmem:[%s489 + $0x8] sm:$0xff] %v492
                  %v494 = vld [vmem:[%s488 + $0x10] sm:$0xff]
                  %495 = vst [vmem:[%s489 + $0x10] sm:$0xff] %v494
                  %v496 = vld [vmem:[%s488 + $0x18] sm:$0xff]
                  %497 = vst [vmem:[%s489 + $0x18] sm:$0xff] %v496
                  %s498 = sadd.s32 1, %s487
                  %p499 = scmp.ge.s32.totalorder %s498, %s480
                  %s500 = scalar_select %p499, 0, %s498
                  %s501 = smul.u32 %s500, 32
                  %s502 = smul.u32 %s500, 32
                  %s503 = scalar_lea.vmem %s407, %s501 [#allocation5]
                  %s504 = scalar_lea.vmem %s418, %s502
                $region75: #{tpu_custom_call.1} parent=69 // loop_footer
                  %s484 = sadd.s32 %s482, 1
                $region76: #{tpu_custom_call.1} parent=69 // loop_footer_branch
                  %481 = sbr.rel target = $region72
                $region77: #{tpu_custom_call.1} parent=69 // loop_exit
                  _
                %s505 = sshrl.u32 %s414, 2
                %s506 = sand.u32 %s414, 3
                %s507 = smul.u32 %s505, 4
                %s508 = smul.u32 8, %s507
                %s509 = scalar_lea.vmem %s407, %s508 [#allocation5]
                %s510 = smul.u32 8, %s507
                %s511 = scalar_lea.vmem %s418, %s510
                // While loop
                $region78: #{tpu_custom_call.1} parent=69 // loop_pre_header
                  _
                $region79: #{tpu_custom_call.1} parent=69 // loop_header
                  %s513 = sphi 0, %s515
                  %p514 = scmp.ge.s32.totalorder %s513, %s506
                  %s518 = sphi 0, %s525
                  %s519 = sphi %s509, %s528
                  %s520 = sphi %s511, %s529
                $region80: #{tpu_custom_call.1} parent=69 // loop_header_branch
                  %517 = sbr.rel (%p514) target = $region84
                $region81: #{tpu_custom_call.1} parent=69 // loop_body
                  %v521 = vld [vmem:[%s519] sm:$0xff]
                  %522 = vst [vmem:[%s520] sm:$0xff] %v521
                  %s523 = sadd.s32 1, %s518
                  %p524 = scmp.ge.s32.totalorder %s523, %s506
                  %s525 = scalar_select %p524, 0, %s523
                  %s526 = smul.u32 %s525, 8
                  %s527 = smul.u32 %s525, 8
                  %s528 = scalar_lea.vmem %s509, %s526 [#allocation5]
                  %s529 = scalar_lea.vmem %s511, %s527
                $region82: #{tpu_custom_call.1} parent=69 // loop_footer
                  %s515 = sadd.s32 %s513, 1
                $region83: #{tpu_custom_call.1} parent=69 // loop_footer_branch
                  %512 = sbr.rel target = $region79
                $region84: #{tpu_custom_call.1} parent=69 // loop_exit
                  _
              $region70: #{tpu_custom_call.1} parent=47 // pred_fallthru
                _
              // Predicated region
              $region85: #{tpu_custom_call.1} parent=47 // pred_check
                _
              $region86: #{tpu_custom_call.1} parent=47 // pred_check_branch
                %531 = sbr.rel target = $region88
              $region87: #{tpu_custom_call.1} parent=47 // pred_region
                _
              $region88: #{tpu_custom_call.1} parent=47 // pred_fallthru
                _
            $region48: #{tpu_custom_call.1} parent=43 // pred_fallthru
              _
            // Predicated region
            $region49: #{tpu_custom_call.1} parent=43 // pred_check
              _
            $region50: #{tpu_custom_call.1} parent=43 // pred_check_branch
              %425 = sbr.rel target = $region52
            $region51: #{tpu_custom_call.1} parent=43 // pred_region
              %s427 = ssub.s32 256, 1
              %s428 = sshrl.u32 %s414, 2
              // While loop
              $region53: #{tpu_custom_call.1} parent=51 // loop_pre_header
                _
              $region54: #{tpu_custom_call.1} parent=51 // loop_header
                %s430 = sphi 0, %s432
                %p431 = scmp.ge.s32.totalorder %s430, %s428
                %s435 = sphi 0, %s448
                %s436 = sphi %s407, %s451
                %s437 = sphi %s418, %s452
              $region55: #{tpu_custom_call.1} parent=51 // loop_header_branch
                %434 = sbr.rel (%p431) target = $region59
              $region56: #{tpu_custom_call.1} parent=51 // loop_body
                %v438 = vld [vmem:[%s436] sm:%s427]
                %439 = vst [vmem:[%s437] sm:%s427] %v438
                %v440 = vld [vmem:[%s436 + $0x8] sm:%s427]
                %441 = vst [vmem:[%s437 + $0x8] sm:%s427] %v440
                %v442 = vld [vmem:[%s436 + $0x10] sm:%s427]
                %443 = vst [vmem:[%s437 + $0x10] sm:%s427] %v442
                %v444 = vld [vmem:[%s436 + $0x18] sm:%s427]
                %445 = vst [vmem:[%s437 + $0x18] sm:%s427] %v444
                %s446 = sadd.s32 1, %s435
                %p447 = scmp.ge.s32.totalorder %s446, %s428
                %s448 = scalar_select %p447, 0, %s446
                %s449 = smul.u32 %s448, 32
                %s450 = smul.u32 %s448, 32
                %s451 = scalar_lea.vmem %s407, %s449 [#allocation5]
                %s452 = scalar_lea.vmem %s418, %s450
              $region57: #{tpu_custom_call.1} parent=51 // loop_footer
                %s432 = sadd.s32 %s430, 1
              $region58: #{tpu_custom_call.1} parent=51 // loop_footer_branch
                %429 = sbr.rel target = $region54
              $region59: #{tpu_custom_call.1} parent=51 // loop_exit
                _
              %s453 = sshrl.u32 %s414, 2
              %s454 = sand.u32 %s414, 3
              %s455 = smul.u32 %s453, 4
              %s456 = smul.u32 8, %s455
              %s457 = scalar_lea.vmem %s407, %s456 [#allocation5]
              %s458 = smul.u32 8, %s455
              %s459 = scalar_lea.vmem %s418, %s458
              // While loop
              $region60: #{tpu_custom_call.1} parent=51 // loop_pre_header
                _
              $region61: #{tpu_custom_call.1} parent=51 // loop_header
                %s461 = sphi 0, %s463
                %p462 = scmp.ge.s32.totalorder %s461, %s454
                %s466 = sphi 0, %s473
                %s467 = sphi %s457, %s476
                %s468 = sphi %s459, %s477
              $region62: #{tpu_custom_call.1} parent=51 // loop_header_branch
                %465 = sbr.rel (%p462) target = $region66
              $region63: #{tpu_custom_call.1} parent=51 // loop_body
                %v469 = vld [vmem:[%s467] sm:%s427]
                %470 = vst [vmem:[%s468] sm:%s427] %v469
                %s471 = sadd.s32 1, %s466
                %p472 = scmp.ge.s32.totalorder %s471, %s454
                %s473 = scalar_select %p472, 0, %s471
                %s474 = smul.u32 %s473, 8
                %s475 = smul.u32 %s473, 8
                %s476 = scalar_lea.vmem %s457, %s474 [#allocation5]
                %s477 = scalar_lea.vmem %s459, %s475
              $region64: #{tpu_custom_call.1} parent=51 // loop_footer
                %s463 = sadd.s32 %s461, 1
              $region65: #{tpu_custom_call.1} parent=51 // loop_footer_branch
                %460 = sbr.rel target = $region61
              $region66: #{tpu_custom_call.1} parent=51 // loop_exit
                _
            $region52: #{tpu_custom_call.1} parent=43 // pred_fallthru
              _
          $region44: #{tpu_custom_call.1} parent=39 // pred_fallthru
            _
          %532 = vnop
        $region40: #{tpu_custom_call.1} parent=31 // pred_fallthru
          _
      $region32: #{tpu_custom_call.1} parent=5 // pred_fallthru
        _
      %p533 = scmp.le.s32.totalorder 2, %s13
      // Predicated region
      $region89: #{tpu_custom_call.1} parent=5 // pred_check
        %p534 = pneg %p533
      $region90: #{tpu_custom_call.1} parent=5 // pred_check_branch
        %536 = sbr.rel (%p534) target = $region92
      $region91: #{tpu_custom_call.1} parent=5 // pred_region
        %s537 = ssub.s32 %s13, 2
        // Predicated region
        $region93: #{tpu_custom_call.1} parent=91 // pred_check
          %p538 = pneg %p110
        $region94: #{tpu_custom_call.1} parent=91 // pred_check_branch
          %540 = sbr.rel (%p538) target = $region96
        $region95: #{tpu_custom_call.1} parent=91 // pred_region
          %s541 = sand.u32 %s95, 1
          %s542 = sand.u32 %s95, 1
          %s543 = smul.addr %s542, 32
          %s544 = scalar_lea.vmem [#allocation5], %s543
        $region96: #{tpu_custom_call.1} parent=91 // pred_fallthru
          _
      $region92: #{tpu_custom_call.1} parent=5 // pred_fallthru
        _
    $region6: #{tpu_custom_call.1} parent=1 // loop_footer
      %s17 = sadd.s32 1, %s13
    $region7: #{tpu_custom_call.1} parent=1 // loop_footer_branch
      %12 = sbr.rel target = $region3
    $region8: #{tpu_custom_call.1} parent=1 // loop_exit
      _
    %545 = vsyncpa [#allocation4], 1
    %s546 = scalar_lea.sflag [#allocation4], 1
    %547 = vsyncpa %s546, 1

</llo_original>
